<compile_context>
chip_gen: v7x
topology: tpu7x:2x2x1
jax: 0.10.0
libtpu: 0.0.40
codegen_flags: <defaults>
</compile_context>

<pallas_src>
import functools

import jax
import jax.numpy as jnp
from jax.experimental import pallas as pl
from jax.experimental.pallas import tpu as pltpu


# --------------------------------------------------------------------------- #
# Helpers
# --------------------------------------------------------------------------- #
def _round_up(x, m):
    return ((x + m - 1) // m) * m


_VMEM_BUDGET = None


def _vmem_budget_bytes():
    """Conservative per-core VMEM budget: 75% of physical (headroom for compiler
    scratch / semaphores / double-buffered outputs). ~48 MiB v7x, ~96 MiB v5e/v6e."""
    global _VMEM_BUDGET
    if _VMEM_BUDGET is None:
        try:
            info = pltpu.get_tpu_info()
            cap = int(getattr(info, "vmem_capacity_bytes", 64 * 1024 * 1024))
        except Exception:
            cap = 64 * 1024 * 1024
        _VMEM_BUDGET = (cap * 3) // 4
    return _VMEM_BUDGET


def _masked_log_softmax(z, num_classes):
    """log_softmax over dim=1 restricted to the first num_classes lanes (f32 path)."""
    col = jax.lax.broadcasted_iota(jnp.int32, z.shape, 1)
    z = jnp.where(col < num_classes, z, jnp.finfo(jnp.float32).min)
    m = jnp.max(z, axis=-1, keepdims=True)
    zs = z - m
    lse = jnp.log(jnp.sum(jnp.exp(zs), axis=-1, keepdims=True))
    return zs - lse


# --------------------------------------------------------------------------- #
# Kernels
# --------------------------------------------------------------------------- #
def fused_gcn_kernel(a_ref, xw1_ref, b1_ref, w2_ref, b2_ref, o_ref, *, num_classes):
    """Whole-model kernel when dense A_hat fits in VMEM (read A once, both layers).

    a_ref   : (Np, Np) bf16   normalized adjacency (padded)
    xw1_ref : (Np, Hp) bf16   precomputed X @ W1, lane-padded
    b1_ref  : (1, Hp)  f32
    w2_ref  : (Hp, Hp) bf16
    b2_ref  : (1, Hp)  f32
    o_ref   : (Np, Hp) f32    lane-dense; padded lanes sliced off outside
    """
    a = a_ref[...]                                           # A_hat read ONCE
    h1 = jnp.dot(a, xw1_ref[...], preferred_element_type=jnp.float32) + b1_ref[...]
    h1 = jnp.maximum(h1, 0.0)                                # ReLU
    # Dropout: inference semantics (training=False) -> identity.
    g = jnp.dot(h1.astype(jnp.bfloat16), w2_ref[...],
                preferred_element_type=jnp.float32)          # W2 folded: A(HW)+b
    z = jnp.dot(a, g.astype(jnp.bfloat16),
                preferred_element_type=jnp.float32) + b2_ref[...]
    o_ref[...] = _masked_log_softmax(z, num_classes)


def gcn_layer1_kernel(a_ref, xw1_ref, b1_ref, w2_ref, g_ref, acc_ref):
    """g_tile = relu(A_tile @ XW1 + b1) @ W2, K-tiled with an f32 accumulator.

    a_ref   : (TM, TK) bf16
    xw1_ref : (TK, Hp) bf16
    b1_ref  : (1, Hp)  f32
    w2_ref  : (Hp, Hp) bf16
    g_ref   : (TM, Hp) bf16   (output, resident across the k axis)
    acc_ref : (TM, Hp) f32    VMEM scratch accumulator
    """
    k = pl.program_id(1)

    @pl.when(k == 0)
    def _init():
        acc_ref[...] = jnp.zeros_like(acc_ref)

    acc_ref[...] += jnp.dot(a_ref[...], xw1_ref[...],
                            preferred_element_type=jnp.float32)

    @pl.when(k == pl.num_programs(1) - 1)
    def _finalize():
        h = jnp.maximum(acc_ref[...] + b1_ref[...], 0.0)     # bias + ReLU
        # Dropout: identity (inference semantics).
        g_ref[...] = jnp.dot(h.astype(jnp.bfloat16), w2_ref[...],
                             preferred_element_type=jnp.float32).astype(g_ref.dtype)


def gcn_layer2_kernel(a_ref, g_ref, b2_ref, o_ref, acc_ref, *, num_classes):
    """out_tile = log_softmax(A_tile @ g + b2), K-tiled with an f32 accumulator.

    a_ref : (TM, TK) bf16
    g_ref : (TK, Hp) bf16
    b2_ref: (1, Hp)  f32
    o_ref : (TM, Hp) f32
    acc_ref: (TM, Hp) f32 scratch
    """
    k = pl.program_id(1)

    @pl.when(k == 0)
    def _init():
        acc_ref[...] = jnp.zeros_like(acc_ref)

    acc_ref[...] += jnp.dot(a_ref[...], g_ref[...],
                            preferred_element_type=jnp.float32)

    @pl.when(k == pl.num_programs(1) - 1)
    def _finalize():
        z = acc_ref[...] + b2_ref[...]
        o_ref[...] = _masked_log_softmax(z, num_classes)


# --------------------------------------------------------------------------- #
# Glue
# --------------------------------------------------------------------------- #
def build_normalized_adjacency(edge_index, num_nodes):
    """Dense D^{-1/2}(A+I)D^{-1/2} matching PyG gcn_norm (plain-JAX glue).

    The graph is static, so call this ONCE and reuse the result.
    """
    src = edge_index[0]
    dst = edge_index[1]
    loop = jnp.arange(num_nodes, dtype=edge_index.dtype)
    src = jnp.concatenate([src, loop])
    dst = jnp.concatenate([dst, loop])
    deg = jnp.zeros((num_nodes,), jnp.float32).at[dst].add(1.0)
    dis = jnp.where(deg > 0, 1.0 / jnp.sqrt(deg), 0.0)
    w = dis[src] * dis[dst]
    a_hat = jnp.zeros((num_nodes, num_nodes), jnp.float32).at[dst, src].add(w)
    return a_hat


def simple_gcn_forward(x, a_hat, w1, b1, w2, b2, *, force_two_pass=False):
    """Two-layer GCN forward (a_hat precomputed). Fused single call when A fits VMEM,
    row+K tiled two-pass path otherwise."""
    n, _ = x.shape
    hidden = w1.shape[1]
    hp = _round_up(hidden, 128)          # lane-dense feature dim
    bf16 = jnp.bfloat16

    # Hoist the tiny X @ W1 product out of the kernels (cheap wrapper op).
    xw1 = jnp.dot(x.astype(jnp.float32), w1.astype(jnp.float32))  # (n, hidden), f32

    b1_row = b1.reshape(1, hidden).astype(jnp.float32)
    b2_row = b2.reshape(1, hidden).astype(jnp.float32)
    budget = _vmem_budget_bytes()

    # ------------- Fused single-call path: A resident in VMEM, read once ----------- #
    n_f = _round_up(n, 128)              # multiple of 128 lanes (and 16 sublanes)
    fused_bytes = 2 * n_f * n_f + 14 * n_f * hp + 2 * hp * hp + 8 * hp
    if (not force_two_pass) and fused_bytes <= budget // 2:
        a_p = jnp.zeros((n_f, n_f), bf16).at[:n, :n].set(a_hat.astype(bf16))
        xw1_p = jnp.zeros((n_f, hp), bf16).at[:n, :hidden].set(xw1.astype(bf16))
        b1_p = jnp.zeros((1, hp), jnp.float32).at[:, :hidden].set(b1_row)
        w2_p = jnp.zeros((hp, hp), bf16).at[:hidden, :hidden].set(w2.astype(bf16))
        b2_p = jnp.zeros((1, hp), jnp.float32).at[:, :hidden].set(b2_row)

        cost = pl.CostEstimate(
            flops=4 * n_f * n_f * hp + 2 * n_f * hp * hp,
            transcendentals=n_f * hp,
            bytes_accessed=(a_p.size + xw1_p.size + w2_p.size) * 2
            + (b1_p.size + b2_p.size) * 4 + n_f * hp * 4,
        )
        vmem_spec = pl.BlockSpec(memory_space=pltpu.MemorySpace.VMEM)
        out_p = pl.pallas_call(
            functools.partial(fused_gcn_kernel, num_classes=hidden),
            out_shape=jax.ShapeDtypeStruct((n_f, hp), jnp.float32),
            in_specs=[vmem_spec] * 5,
            out_specs=vmem_spec,
            compiler_params=pltpu.CompilerParams(vmem_limit_bytes=budget),
            cost_estimate=cost,
        )(a_p, xw1_p, b1_p, w2_p, b2_p)
        return out_p[:n, :hidden]

    # --------- Two-pass row+K tiled path: VMEM footprint independent of N ---------- #
    tile = 256                           # multiple of 128 lanes / 16 sublanes
    n_pad = _round_up(n, tile)
    tm = tk = tile
    nr, nk = n_pad // tm, n_pad // tk

    a_p = jnp.zeros((n_pad, n_pad), bf16).at[:n, :n].set(a_hat.astype(bf16))
    xw1_p = jnp.zeros((n_pad, hp), bf16).at[:n, :hidden].set(xw1.astype(bf16))
    b1_p = jnp.zeros((1, hp), jnp.float32).at[:, :hidden].set(b1_row)
    w2_p = jnp.zeros((hp, hp), bf16).at[:hidden, :hidden].set(w2.astype(bf16))
    b2_p = jnp.zeros((1, hp), jnp.float32).at[:, :hidden].set(b2_row)

    cparams = pltpu.CompilerParams(
        dimension_semantics=("parallel", "arbitrary"),   # row tiles parallel, K reduce
        vmem_limit_bytes=budget,
    )

    # ---- Pass 1: g = relu(A @ XW1 + b1) @ W2  (W2 folded here, off the softmax pass)
    cost1 = pl.CostEstimate(
        flops=2 * n_pad * n_pad * hp + 2 * n_pad * hp * hp,
        transcendentals=0,
        bytes_accessed=(a_p.size + xw1_p.size + w2_p.size) * 2
        + b1_p.size * 4 + n_pad * hp * 2,
    )
    g = pl.pallas_call(
        gcn_layer1_kernel,
        out_shape=jax.ShapeDtypeStruct((n_pad, hp), bf16),
        grid=(nr, nk),
        in_specs=[
            pl.BlockSpec((tm, tk), lambda i, k: (i, k)),   # A tile
            pl.BlockSpec((tk, hp), lambda i, k: (k, 0)),   # XW1 K-slab
            pl.BlockSpec((1, hp), lambda i, k: (0, 0)),    # b1 (grid-invariant, tiny)
            pl.BlockSpec((hp, hp), lambda i, k: (0, 0)),   # W2 (grid-invariant, tiny)
        ],
        out_specs=pl.BlockSpec((tm, hp), lambda i, k: (i, 0)),
        scratch_shapes=[pltpu.VMEM((tm, hp), jnp.float32)],
        compiler_params=cparams,
        cost_estimate=cost1,
    )(a_p, xw1_p, b1_p, w2_p)

    # ---- Pass 2: out = log_softmax(A @ g + b2)  (no GEMM besides the aggregation)
    cost2 = pl.CostEstimate(
        flops=2 * n_pad * n_pad * hp,
        transcendentals=n_pad * hp,
        bytes_accessed=(a_p.size + g.size) * 2 + b2_p.size * 4 + n_pad * hp * 4,
    )
    out_p = pl.pallas_call(
        functools.partial(gcn_layer2_kernel, num_classes=hidden),
        out_shape=jax.ShapeDtypeStruct((n_pad, hp), jnp.float32),
        grid=(nr, nk),
        in_specs=[
            pl.BlockSpec((tm, tk), lambda i, k: (i, k)),   # A tile
            pl.BlockSpec((tk, hp), lambda i, k: (k, 0)),   # g K-slab
            pl.BlockSpec((1, hp), lambda i, k: (0, 0)),    # b2
        ],
        out_specs=pl.BlockSpec((tm, hp), lambda i, k: (i, 0)),
        scratch_shapes=[pltpu.VMEM((tm, hp), jnp.float32)],
        compiler_params=cparams,
        cost_estimate=cost2,
    )(a_p, g, b2_p)

    return out_p[:n, :hidden]


# --------------------------------------------------------------------------- #
# References
# --------------------------------------------------------------------------- #
def reference_forward_f32(x, a_hat, w1, b1, w2, b2):
    """Pure-f32 JAX reference (module semantics, dropout=identity)."""
    h1 = a_hat @ (x @ w1) + b1
    h1 = jnp.maximum(h1, 0.0)
    h2 = a_hat @ (h1 @ w2) + b2
    return jax.nn.log_softmax(h2, axis=1)


def reference_forward_bf16(x, a_hat, w1, b1, w2, b2):
    """Plain-JAX reference matching the kernels' bf16-operand / f32-accumulate recipe."""
    bf = jnp.bfloat16
    a = a_hat.astype(bf)
    xw1 = (x @ w1).astype(bf)
    h1 = jnp.dot(a, xw1, preferred_element_type=jnp.float32) + b1
    h1 = jnp.maximum(h1, 0.0)
    g = jnp.dot(h1.astype(bf), w2.astype(bf), preferred_element_type=jnp.float32)
    z = jnp.dot(a, g.astype(bf), preferred_element_type=jnp.float32) + b2
    return jax.nn.log_softmax(z, axis=1)


# --------------------------------------------------------------------------- #
# Demo
# --------------------------------------------------------------------------- #
if __name__ == "__main__":
    in_features = 8
    hidden_dim = 16

    key = jax.random.PRNGKey(0)
    k_x, k_w1, k_w2, k_b1, k_b2, k_x2 = jax.random.split(key, 6)

    # Glorot-style init for GCN weights, small random biases (deterministic).
    w1 = jax.random.uniform(
        k_w1, (in_features, hidden_dim), jnp.float32, -1.0, 1.0
    ) * jnp.sqrt(6.0 / (in_features + hidden_dim))
    w2 = jax.random.uniform(
        k_w2, (hidden_dim, hidden_dim), jnp.float32, -1.0, 1.0
    ) * jnp.sqrt(6.0 / (hidden_dim + hidden_dim))
    b1 = 0.1 * jax.random.normal(k_b1, (hidden_dim,), jnp.float32)
    b2 = 0.1 * jax.random.normal(k_b2, (hidden_dim,), jnp.float32)

    gcn_forward = jax.jit(simple_gcn_forward, static_argnames=("force_two_pass",))

    # --- Case 1: small graph -> single fused pallas_call (A_hat VMEM-resident) -----
    n1 = 16
    x1 = jax.random.normal(k_x, (n1, in_features), jnp.float32)
    s1 = jnp.arange(n1, dtype=jnp.int32)
    d1 = (s1 + 1) % n1
    edge_index1 = jnp.stack(
        [jnp.concatenate([s1, d1]), jnp.concatenate([d1, s1])], axis=0
    )
    a1 = jax.block_until_ready(build_normalized_adjacency(edge_index1, n1))  # built ONCE

    out1 = jax.block_until_ready(gcn_forward(x1, a1, w1, b1, w2, b2,
                                             force_two_pass=False))
    assert out1.shape == (n1, hidden_dim)
    assert jnp.allclose(out1, reference_forward_bf16(x1, a1, w1, b1, w2, b2),
                        atol=2e-3, rtol=2e-3), "fused path mismatch vs bf16-matched ref"
    assert jnp.allclose(out1, reference_forward_f32(x1, a1, w1, b1, w2, b2),
                        atol=1e-1, rtol=1e-1), "fused path mismatch vs f32 ref"

    # --- Case 2: larger / odd-sized graph -> row+K tiled two-pass path -------------
    n2 = 300
    x2 = jax.random.normal(k_x2, (n2, in_features), jnp.float32)
    s2 = jnp.arange(n2, dtype=jnp.int32)
    d2 = (s2 + 1) % n2
    d2b = (s2 + 7) % n2
    edge_index2 = jnp.stack(
        [jnp.concatenate([s2, d2, s2, d2b]), jnp.concatenate([d2, s2, d2b, s2])], axis=0
    )
    a2 = jax.block_until_ready(build_normalized_adjacency(edge_index2, n2))

    out2 = jax.block_until_ready(gcn_forward(x2, a2, w1, b1, w2, b2,
                                             force_two_pass=True))
    assert out2.shape == (n2, hidden_dim)
    assert jnp.allclose(out2, reference_forward_bf16(x2, a2, w1, b1, w2, b2),
                        atol=3e-3, rtol=3e-3), "tiled path mismatch vs bf16-matched ref"
    assert jnp.allclose(out2, reference_forward_f32(x2, a2, w1, b1, w2, b2),
                        atol=1e-1, rtol=1e-1), "tiled path mismatch vs f32 ref"

    print("KERNEL_OK")
</pallas_src>

<mosaic_0001>
module attributes {stable_mosaic.version = 11 : i64} {
  func.func @fused_gcn_kernel(%arg0: memref<128x128xbf16, #tpu.memory_space<vmem>>, %arg1: memref<128x128xbf16, #tpu.memory_space<vmem>>, %arg2: memref<1x128xf32, #tpu.memory_space<vmem>>, %arg3: memref<128x128xbf16, #tpu.memory_space<vmem>>, %arg4: memref<1x128xf32, #tpu.memory_space<vmem>>, %arg5: memref<128x128xf32, #tpu.memory_space<vmem>>) attributes {dimension_semantics = [], scalar_prefetch = 0 : i64, scratch_operands = 0 : i64, tpu.core_type = #tpu.core_type<tc>} {
    %c0 = arith.constant 0 : index
    %c0_0 = arith.constant 0 : index
    %0 = vector.load %arg0[%c0, %c0_0] : memref<128x128xbf16, #tpu.memory_space<vmem>>, vector<128x128xbf16>
    %c0_1 = arith.constant 0 : index
    %c0_2 = arith.constant 0 : index
    %1 = vector.load %arg1[%c0_1, %c0_2] : memref<128x128xbf16, #tpu.memory_space<vmem>>, vector<128x128xbf16>
    %cst = arith.constant dense<0.000000e+00> : vector<128x128xf32>
    %2 = tpu.matmul %0, %1, %cst {dimension_numbers = #tpu.dot_dimension_numbers<[1], [0], [0], [1], [0, 0, 1, 1], [], []>} : vector<128x128xbf16>, vector<128x128xbf16>, vector<128x128xf32> -> vector<128x128xf32>
    %c0_3 = arith.constant 0 : index
    %c0_4 = arith.constant 0 : index
    %3 = vector.load %arg2[%c0_3, %c0_4] : memref<1x128xf32, #tpu.memory_space<vmem>>, vector<1x128xf32>
    %4 = vector.broadcast %3 : vector<1x128xf32> to vector<128x128xf32>
    %5 = arith.addf %2, %4 : vector<128x128xf32>
    %cst_5 = arith.constant 0.000000e+00 : f32
    %6 = vector.broadcast %cst_5 : f32 to vector<128x128xf32>
    %7 = arith.maximumf %5, %6 : vector<128x128xf32>
    %8 = arith.truncf %7 : vector<128x128xf32> to vector<128x128xbf16>
    %c0_6 = arith.constant 0 : index
    %c0_7 = arith.constant 0 : index
    %9 = vector.load %arg3[%c0_6, %c0_7] : memref<128x128xbf16, #tpu.memory_space<vmem>>, vector<128x128xbf16>
    %cst_8 = arith.constant dense<0.000000e+00> : vector<128x128xf32>
    %10 = tpu.matmul %8, %9, %cst_8 {dimension_numbers = #tpu.dot_dimension_numbers<[1], [0], [0], [1], [0, 0, 1, 1], [], []>} : vector<128x128xbf16>, vector<128x128xbf16>, vector<128x128xf32> -> vector<128x128xf32>
    %11 = arith.truncf %10 : vector<128x128xf32> to vector<128x128xbf16>
    %cst_9 = arith.constant dense<0.000000e+00> : vector<128x128xf32>
    %12 = tpu.matmul %0, %11, %cst_9 {dimension_numbers = #tpu.dot_dimension_numbers<[1], [0], [0], [1], [0, 0, 1, 1], [], []>} : vector<128x128xbf16>, vector<128x128xbf16>, vector<128x128xf32> -> vector<128x128xf32>
    %c0_10 = arith.constant 0 : index
    %c0_11 = arith.constant 0 : index
    %13 = vector.load %arg4[%c0_10, %c0_11] : memref<1x128xf32, #tpu.memory_space<vmem>>, vector<1x128xf32>
    %14 = vector.broadcast %13 : vector<1x128xf32> to vector<128x128xf32>
    %15 = arith.addf %12, %14 : vector<128x128xf32>
    %16 = tpu.iota {dimensions = array<i32: 1>} : vector<128x128xi32>
    %c16_i32 = arith.constant 16 : i32
    %17 = vector.broadcast %c16_i32 : i32 to vector<128x128xi32>
    %18 = arith.cmpi slt, %16, %17 : vector<128x128xi32>
    %cst_12 = arith.constant -3.40282347E+38 : f32
    %19 = vector.broadcast %cst_12 : f32 to vector<128x128xf32>
    %20 = arith.select %18, %15, %19 : vector<128x128xi1>, vector<128x128xf32>
    %cst_13 = arith.constant dense<0xFF800000> : vector<128xf32>
    %21 = vector.multi_reduction <maximumf>, %20, %cst_13 [1] : vector<128x128xf32> to vector<128xf32>
    %22 = vector.shape_cast %21 : vector<128xf32> to vector<128x1xf32>
    %23 = vector.broadcast %22 : vector<128x1xf32> to vector<128x128xf32>
    %24 = arith.subf %20, %23 : vector<128x128xf32>
    %25 = math.exp %24 : vector<128x128xf32>
    %cst_14 = arith.constant dense<0.000000e+00> : vector<128xf32>
    %26 = vector.multi_reduction <add>, %25, %cst_14 [1] : vector<128x128xf32> to vector<128xf32>
    %27 = vector.shape_cast %26 : vector<128xf32> to vector<128x1xf32>
    %28 = math.log %27 : vector<128x1xf32>
    %29 = vector.broadcast %28 : vector<128x1xf32> to vector<128x128xf32>
    %30 = arith.subf %24, %29 : vector<128x128xf32>
    %c0_15 = arith.constant 0 : index
    %c0_16 = arith.constant 0 : index
    %31 = vector.load %arg5[%c0_15, %c0_16] : memref<128x128xf32, #tpu.memory_space<vmem>>, vector<128x128xf32>
    tpu.vector_store %arg5[%c0_15, %c0_16], %30 {strides = array<i32>} : memref<128x128xf32, #tpu.memory_space<vmem>>, vector<128x128xf32>,
    return
  }
}

</mosaic_0001>

<llo_original>
// kernel: simple_gcn_forward.1
$region0: #{simple_gcn_forward.1}
  #allocation0 [shape = 'u32[]', space=smem, size = 0x4, offset = 0x4, fixed_abs, tag = 'smem constant byte address 0x4 - core index']
  #allocation1 [shape = 'u32[144,128]{1,0:T(1,128)}', space=vmem, size = 0x12000, scoped, tag = 'internal scratch']
  %s0 = inlined_call_operand.vmem [shape: bf16[128,128], index: 0, kind: input, shape index: {}]
  %s1 = inlined_call_operand.vmem [shape: bf16[128,128], index: 1, kind: input, shape index: {}]
  %s2 = inlined_call_operand.vmem [shape: f32[1,128], index: 2, kind: input, shape index: {}]
  %s3 = inlined_call_operand.vmem [shape: bf16[128,128], index: 3, kind: input, shape index: {}]
  %s4 = inlined_call_operand.vmem [shape: f32[1,128], index: 4, kind: input, shape index: {}]
  %s5 = inlined_call_operand.vmem [shape: f32[128,128], index: 5, kind: output, shape index: {}]
  %s6 = sld [smem:[#allocation0]]
  $region30: #{simple_gcn_forward.1} parent=0
    _
  %s8 = ssub.s32 1, %s6
  %s9 = scalar_select 0, %s8, %s6
  // Predicated region
  $region2: #{simple_gcn_forward.1} parent=0 // pred_check
    _
  $region3: #{simple_gcn_forward.1} parent=0 // pred_check_branch
    %11 = sbr.rel (0) target = $region5
  $region4: #{simple_gcn_forward.1} parent=0 // pred_region
    _
  $region5: #{simple_gcn_forward.1} parent=0 // pred_fallthru
    _
  // Predicated region
  $region6: #{simple_gcn_forward.1} parent=0 // pred_check
    _
  $region7: #{simple_gcn_forward.1} parent=0 // pred_check_branch
    %13 = sbr.rel (0) target = $region9
  $region8: #{simple_gcn_forward.1} parent=0 // pred_region
    _
  $region9: #{simple_gcn_forward.1} parent=0 // pred_fallthru
    _
  // Predicated region
  $region10: #{simple_gcn_forward.1} parent=0 // pred_check
    _
  $region11: #{simple_gcn_forward.1} parent=0 // pred_check_branch
    %15 = sbr.rel (0) target = $region13
  $region12: #{simple_gcn_forward.1} parent=0 // pred_region
    _
  $region13: #{simple_gcn_forward.1} parent=0 // pred_fallthru
    _
  // Predicated region
  $region14: #{simple_gcn_forward.1} parent=0 // pred_check
    _
  $region15: #{simple_gcn_forward.1} parent=0 // pred_check_branch
    %17 = sbr.rel (0) target = $region17
  $region16: #{simple_gcn_forward.1} parent=0 // pred_region
    _
  $region17: #{simple_gcn_forward.1} parent=0 // pred_fallthru
    _
  // Predicated region
  $region18: #{simple_gcn_forward.1} parent=0 // pred_check
    _
  $region19: #{simple_gcn_forward.1} parent=0 // pred_check_branch
    %19 = sbr.rel (0) target = $region21
  $region20: #{simple_gcn_forward.1} parent=0 // pred_region
    _
  $region21: #{simple_gcn_forward.1} parent=0 // pred_fallthru
    _
  %v21 = vld [vmem:[%s0] sm:$0xf]
  %v22 = vld [vmem:[%s0 + $0x4] sm:$0xf]
  %v23 = vld [vmem:[%s0 + $0x8] sm:$0xf]
  %v24 = vld [vmem:[%s0 + $0xc] sm:$0xf]
  %v25 = vld [vmem:[%s0 + $0x10] sm:$0xf]
  %v26 = vld [vmem:[%s0 + $0x14] sm:$0xf]
  %v27 = vld [vmem:[%s0 + $0x18] sm:$0xf]
  %v28 = vld [vmem:[%s0 + $0x1c] sm:$0xf]
  %v29 = vld [vmem:[%s0 + $0x20] sm:$0xf]
  %v30 = vld [vmem:[%s0 + $0x24] sm:$0xf]
  %v31 = vld [vmem:[%s0 + $0x28] sm:$0xf]
  %v32 = vld [vmem:[%s0 + $0x2c] sm:$0xf]
  %v33 = vld [vmem:[%s0 + $0x30] sm:$0xf]
  %v34 = vld [vmem:[%s0 + $0x34] sm:$0xf]
  %v35 = vld [vmem:[%s0 + $0x38] sm:$0xf]
  %v36 = vld [vmem:[%s0 + $0x3c] sm:$0xf]
  %v37 = vld [vmem:[%s1] sm:$0xf]
  %v38 = vld [vmem:[%s1 + $0x4] sm:$0xf]
  %v39 = vld [vmem:[%s1 + $0x8] sm:$0xf]
  %v40 = vld [vmem:[%s1 + $0xc] sm:$0xf]
  %v41 = vld [vmem:[%s1 + $0x10] sm:$0xf]
  %v42 = vld [vmem:[%s1 + $0x14] sm:$0xf]
  %v43 = vld [vmem:[%s1 + $0x18] sm:$0xf]
  %v44 = vld [vmem:[%s1 + $0x1c] sm:$0xf]
  %v45 = vld [vmem:[%s1 + $0x20] sm:$0xf]
  %v46 = vld [vmem:[%s1 + $0x24] sm:$0xf]
  %v47 = vld [vmem:[%s1 + $0x28] sm:$0xf]
  %v48 = vld [vmem:[%s1 + $0x2c] sm:$0xf]
  %v49 = vld [vmem:[%s1 + $0x30] sm:$0xf]
  %v50 = vld [vmem:[%s1 + $0x34] sm:$0xf]
  %v51 = vld [vmem:[%s1 + $0x38] sm:$0xf]
  %v52 = vld [vmem:[%s1 + $0x3c] sm:$0xf]
  %v53 = vld [vmem:[%s2] sm:$0x1]
  %v55 = vlaneseq
  %v56 = vshrl.u32 %v55, 7
  %v57 = vsub.s32 0, %v56
  %v58 = vrot.slane %v53, %v57
  %v76 = vunpack.c.l.b16 %v21
  %v77 = vunpack.c.l.b16 %v22
  %v78 = vunpack.c.l.b16 %v23
  %v79 = vunpack.c.l.b16 %v24
  %v80 = vunpack.c.l.b16 %v25
  %v81 = vunpack.c.l.b16 %v26
  %v82 = vunpack.c.l.b16 %v27
  %v83 = vunpack.c.l.b16 %v28
  %v84 = vunpack.c.l.b16 %v29
  %v85 = vunpack.c.l.b16 %v30
  %v86 = vunpack.c.l.b16 %v31
  %v87 = vunpack.c.l.b16 %v32
  %v88 = vunpack.c.l.b16 %v33
  %v89 = vunpack.c.l.b16 %v34
  %v90 = vunpack.c.l.b16 %v35
  %v91 = vunpack.c.l.b16 %v36
  %v92 = vpack.c.b16 %v77, %v76
  %v93 = vpack.c.b16 %v79, %v78
  %v94 = vpack.c.b16 %v81, %v80
  %v95 = vpack.c.b16 %v83, %v82
  %v96 = vpack.c.b16 %v85, %v84
  %v97 = vpack.c.b16 %v87, %v86
  %v98 = vpack.c.b16 %v89, %v88
  %v99 = vpack.c.b16 %v91, %v90
  %v124 = vunpack.c.l.b16 %v37
  %v125 = vunpack.c.l.b16 %v38
  %v126 = vunpack.c.l.b16 %v39
  %v127 = vunpack.c.l.b16 %v40
  %v128 = vunpack.c.l.b16 %v41
  %v129 = vunpack.c.l.b16 %v42
  %v130 = vunpack.c.l.b16 %v43
  %v131 = vunpack.c.l.b16 %v44
  %v132 = vunpack.c.l.b16 %v45
  %v133 = vunpack.c.l.b16 %v46
  %v134 = vunpack.c.l.b16 %v47
  %v135 = vunpack.c.l.b16 %v48
  %v136 = vunpack.c.l.b16 %v49
  %v137 = vunpack.c.l.b16 %v50
  %v138 = vunpack.c.l.b16 %v51
  %v139 = vunpack.c.l.b16 %v52
  %v140 = vpack.c.b16 %v125, %v124
  %v141 = vpack.c.b16 %v127, %v126
  %v142 = vpack.c.b16 %v129, %v128
  %v143 = vpack.c.b16 %v131, %v130
  %v144 = vpack.c.b16 %v133, %v132
  %v145 = vpack.c.b16 %v135, %v134
  %v146 = vpack.c.b16 %v137, %v136
  %v147 = vpack.c.b16 %v139, %v138
  %156 = vmatprep.subr.bf16.mxu0 0
  %157 = vmatpush1.bf16.msra.mxu0 %v140
  %158 = vmatprep.subr.bf16.mxu0 0
  %159 = vmatpush1.bf16.msra.mxu0 %v141
  %160 = vmatprep.subr.bf16.mxu0 0
  %161 = vmatpush1.bf16.msra.mxu0 %v142
  %162 = vmatprep.subr.bf16.mxu0 0
  %163 = vmatpush1.bf16.msra.mxu0 %v143
  %164 = vmatprep.subr.bf16.mxu0 0
  %165 = vmatpush1.bf16.msra.mxu0 %v144
  %166 = vmatprep.subr.bf16.mxu0 0
  %167 = vmatpush1.bf16.msra.mxu0 %v145
  %168 = vmatprep.subr.bf16.mxu0 0
  %169 = vmatpush1.bf16.msra.mxu0 %v146
  %170 = vmatprep.subr.bf16.mxu0 0
  %171 = vmatpush1.bf16.msra.mxu0 %v147
  %172 = vmatprep.subr.bf16.mxu0 0
  %173 = vmatpush1.bf16.msra.mxu0 0
  %174 = vmatprep.subr.bf16.mxu0 0
  %175 = vmatpush1.bf16.msra.mxu0 0
  %176 = vmatprep.subr.bf16.mxu0 0
  %177 = vmatpush1.bf16.msra.mxu0 0
  %178 = vmatprep.subr.bf16.mxu0 0
  %179 = vmatpush1.bf16.msra.mxu0 0
  %180 = vmatprep.subr.bf16.mxu0 0
  %181 = vmatpush1.bf16.msra.mxu0 0
  %182 = vmatprep.subr.bf16.mxu0 0
  %183 = vmatpush1.bf16.msra.mxu0 0
  %184 = vmatprep.subr.bf16.mxu0 0
  %185 = vmatpush1.bf16.msra.mxu0 0
  %186 = vmatprep.subr.bf16.mxu0 0
  %187 = vmatpush1.bf16.msra.mxu0 0
  %188 = vmatprep.mubr.bf16.mxu0 0
  %189 = vmatmul.mubr.bf16.gmra.mrb[0].mxu0 %v92
  %v190 = vpop.f32.mrb[0].mxu0
  %v191 = vadd.f32 %v58, %v190
  %v192 = vpop.f32.mrb[0].mxu0
  %v193 = vpop.f32.mrb[0].mxu0
  %v194 = vadd.f32 %v58, %v193
  %v195 = vpop.f32.mrb[0].mxu0
  %196 = vmatprep.mubr.bf16.mxu0 0
  %197 = vmatmul.mubr.bf16.gmra.mrb[0].mxu0 %v93
  %v198 = vpop.f32.mrb[0].mxu0
  %v199 = vadd.f32 %v58, %v198
  %v200 = vpop.f32.mrb[0].mxu0
  %v201 = vpop.f32.mrb[0].mxu0
  %v202 = vadd.f32 %v58, %v201
  %v203 = vpop.f32.mrb[0].mxu0
  %204 = vmatprep.mubr.bf16.mxu0 0
  %205 = vmatmul.mubr.bf16.gmra.mrb[0].mxu0 %v94
  %v206 = vpop.f32.mrb[0].mxu0
  %v207 = vadd.f32 %v58, %v206
  %v208 = vpop.f32.mrb[0].mxu0
  %v209 = vpop.f32.mrb[0].mxu0
  %v210 = vadd.f32 %v58, %v209
  %v211 = vpop.f32.mrb[0].mxu0
  %212 = vmatprep.mubr.bf16.mxu0 0
  %213 = vmatmul.mubr.bf16.gmra.mrb[0].mxu0 %v95
  %v214 = vpop.f32.mrb[0].mxu0
  %v215 = vadd.f32 %v58, %v214
  %v216 = vpop.f32.mrb[0].mxu0
  %v217 = vpop.f32.mrb[0].mxu0
  %v218 = vadd.f32 %v58, %v217
  %v219 = vpop.f32.mrb[0].mxu0
  %220 = vmatprep.mubr.bf16.mxu0 0
  %221 = vmatmul.mubr.bf16.gmra.mrb[0].mxu0 %v96
  %v222 = vpop.f32.mrb[0].mxu0
  %v223 = vadd.f32 %v58, %v222
  %v224 = vpop.f32.mrb[0].mxu0
  %v225 = vpop.f32.mrb[0].mxu0
  %v226 = vadd.f32 %v58, %v225
  %v227 = vpop.f32.mrb[0].mxu0
  %228 = vmatprep.mubr.bf16.mxu0 0
  %229 = vmatmul.mubr.bf16.gmra.mrb[0].mxu0 %v97
  %v230 = vpop.f32.mrb[0].mxu0
  %v231 = vadd.f32 %v58, %v230
  %v232 = vpop.f32.mrb[0].mxu0
  %v233 = vpop.f32.mrb[0].mxu0
  %v234 = vadd.f32 %v58, %v233
  %v235 = vpop.f32.mrb[0].mxu0
  %236 = vmatprep.mubr.bf16.mxu0 0
  %237 = vmatmul.mubr.bf16.gmra.mrb[0].mxu0 %v98
  %v238 = vpop.f32.mrb[0].mxu0
  %v239 = vadd.f32 %v58, %v238
  %v240 = vpop.f32.mrb[0].mxu0
  %v241 = vpop.f32.mrb[0].mxu0
  %v242 = vadd.f32 %v58, %v241
  %v243 = vpop.f32.mrb[0].mxu0
  %244 = vmatprep.mubr.bf16.mxu0 0
  %245 = vmatmul.mubr.bf16.gmra.mrb[0].mxu0 %v99
  %v246 = vpop.f32.mrb[0].mxu0
  %v247 = vadd.f32 %v58, %v246
  %v248 = vpop.f32.mrb[0].mxu0
  %v249 = vpop.f32.mrb[0].mxu0
  %v250 = vadd.f32 %v58, %v249
  %v251 = vpop.f32.mrb[0].mxu0
  %252 = vdwg.mxu0
  %v253 = vmax.f32 %v191, 0.0
  %v254 = vmax.f32 %v194, 0.0
  %v255 = vmax.f32 %v199, 0.0
  %v256 = vmax.f32 %v202, 0.0
  %v257 = vmax.f32 %v207, 0.0
  %v258 = vmax.f32 %v210, 0.0
  %v259 = vmax.f32 %v215, 0.0
  %v260 = vmax.f32 %v218, 0.0
  %v261 = vmax.f32 %v223, 0.0
  %v262 = vmax.f32 %v226, 0.0
  %v263 = vmax.f32 %v231, 0.0
  %v264 = vmax.f32 %v234, 0.0
  %v265 = vmax.f32 %v239, 0.0
  %v266 = vmax.f32 %v242, 0.0
  %v267 = vmax.f32 %v247, 0.0
  %v268 = vmax.f32 %v250, 0.0
  %v269 = vpack.c.bf16 %v254, %v253
  %v270 = vpack.c.bf16 %v256, %v255
  %v271 = vpack.c.bf16 %v258, %v257
  %v272 = vpack.c.bf16 %v260, %v259
  %v273 = vpack.c.bf16 %v262, %v261
  %v274 = vpack.c.bf16 %v264, %v263
  %v275 = vpack.c.bf16 %v266, %v265
  %v276 = vpack.c.bf16 %v268, %v267
  %v277 = vld [vmem:[%s3] sm:$0xf]
  %v278 = vld [vmem:[%s3 + $0x4] sm:$0xf]
  %v279 = vld [vmem:[%s3 + $0x8] sm:$0xf]
  %v280 = vld [vmem:[%s3 + $0xc] sm:$0xf]
  %v281 = vld [vmem:[%s3 + $0x10] sm:$0xf]
  %v282 = vld [vmem:[%s3 + $0x14] sm:$0xf]
  %v283 = vld [vmem:[%s3 + $0x18] sm:$0xf]
  %v284 = vld [vmem:[%s3 + $0x1c] sm:$0xf]
  %v285 = vld [vmem:[%s3 + $0x20] sm:$0xf]
  %v286 = vld [vmem:[%s3 + $0x24] sm:$0xf]
  %v287 = vld [vmem:[%s3 + $0x28] sm:$0xf]
  %v288 = vld [vmem:[%s3 + $0x2c] sm:$0xf]
  %v289 = vld [vmem:[%s3 + $0x30] sm:$0xf]
  %v290 = vld [vmem:[%s3 + $0x34] sm:$0xf]
  %v291 = vld [vmem:[%s3 + $0x38] sm:$0xf]
  %v292 = vld [vmem:[%s3 + $0x3c] sm:$0xf]
  %v309 = vunpack.c.l.b16 %v277
  %v310 = vunpack.c.l.b16 %v278
  %v311 = vunpack.c.l.b16 %v279
  %v312 = vunpack.c.l.b16 %v280
  %v313 = vunpack.c.l.b16 %v281
  %v314 = vunpack.c.l.b16 %v282
  %v315 = vunpack.c.l.b16 %v283
  %v316 = vunpack.c.l.b16 %v284
  %v317 = vunpack.c.l.b16 %v285
  %v318 = vunpack.c.l.b16 %v286
  %v319 = vunpack.c.l.b16 %v287
  %v320 = vunpack.c.l.b16 %v288
  %v321 = vunpack.c.l.b16 %v289
  %v322 = vunpack.c.l.b16 %v290
  %v323 = vunpack.c.l.b16 %v291
  %v324 = vunpack.c.l.b16 %v292
  %v325 = vpack.c.b16 %v310, %v309
  %v326 = vpack.c.b16 %v312, %v311
  %v327 = vpack.c.b16 %v314, %v313
  %v328 = vpack.c.b16 %v316, %v315
  %v329 = vpack.c.b16 %v318, %v317
  %v330 = vpack.c.b16 %v320, %v319
  %v331 = vpack.c.b16 %v322, %v321
  %v332 = vpack.c.b16 %v324, %v323
  %341 = vmatprep.subr.bf16.mxu0 0
  %342 = vmatpush1.bf16.msra.mxu0 %v325
  %343 = vmatprep.subr.bf16.mxu0 0
  %344 = vmatpush1.bf16.msra.mxu0 %v326
  %345 = vmatprep.subr.bf16.mxu0 0
  %346 = vmatpush1.bf16.msra.mxu0 %v327
  %347 = vmatprep.subr.bf16.mxu0 0
  %348 = vmatpush1.bf16.msra.mxu0 %v328
  %349 = vmatprep.subr.bf16.mxu0 0
  %350 = vmatpush1.bf16.msra.mxu0 %v329
  %351 = vmatprep.subr.bf16.mxu0 0
  %352 = vmatpush1.bf16.msra.mxu0 %v330
  %353 = vmatprep.subr.bf16.mxu0 0
  %354 = vmatpush1.bf16.msra.mxu0 %v331
  %355 = vmatprep.subr.bf16.mxu0 0
  %356 = vmatpush1.bf16.msra.mxu0 %v332
  %357 = vmatprep.subr.bf16.mxu0 0
  %358 = vmatpush1.bf16.msra.mxu0 0
  %359 = vmatprep.subr.bf16.mxu0 0
  %360 = vmatpush1.bf16.msra.mxu0 0
  %361 = vmatprep.subr.bf16.mxu0 0
  %362 = vmatpush1.bf16.msra.mxu0 0
  %363 = vmatprep.subr.bf16.mxu0 0
  %364 = vmatpush1.bf16.msra.mxu0 0
  %365 = vmatprep.subr.bf16.mxu0 0
  %366 = vmatpush1.bf16.msra.mxu0 0
  %367 = vmatprep.subr.bf16.mxu0 0
  %368 = vmatpush1.bf16.msra.mxu0 0
  %369 = vmatprep.subr.bf16.mxu0 0
  %370 = vmatpush1.bf16.msra.mxu0 0
  %371 = vmatprep.subr.bf16.mxu0 0
  %372 = vmatpush1.bf16.msra.mxu0 0
  %373 = vmatprep.mubr.bf16.mxu0 0
  %374 = vmatmul.mubr.bf16.gmra.mrb[0].mxu0 %v269
  %v375 = vpop.f32.mrb[0].mxu0
  %v376 = vadd.f32 0.0, %v375
  %v377 = vpop.f32.mrb[0].mxu0
  %v378 = vpop.f32.mrb[0].mxu0
  %v379 = vadd.f32 0.0, %v378
  %v380 = vpop.f32.mrb[0].mxu0
  %381 = vmatprep.mubr.bf16.mxu0 0
  %382 = vmatmul.mubr.bf16.gmra.mrb[0].mxu0 %v270
  %v383 = vpop.f32.mrb[0].mxu0
  %v384 = vadd.f32 0.0, %v383
  %v385 = vpop.f32.mrb[0].mxu0
  %v386 = vpop.f32.mrb[0].mxu0
  %v387 = vadd.f32 0.0, %v386
  %v388 = vpop.f32.mrb[0].mxu0
  %389 = vmatprep.mubr.bf16.mxu0 0
  %390 = vmatmul.mubr.bf16.gmra.mrb[0].mxu0 %v271
  %v391 = vpop.f32.mrb[0].mxu0
  %v392 = vadd.f32 0.0, %v391
  %v393 = vpop.f32.mrb[0].mxu0
  %v394 = vpop.f32.mrb[0].mxu0
  %v395 = vadd.f32 0.0, %v394
  %v396 = vpop.f32.mrb[0].mxu0
  %397 = vmatprep.mubr.bf16.mxu0 0
  %398 = vmatmul.mubr.bf16.gmra.mrb[0].mxu0 %v272
  %v399 = vpop.f32.mrb[0].mxu0
  %v400 = vadd.f32 0.0, %v399
  %v401 = vpop.f32.mrb[0].mxu0
  %v402 = vpop.f32.mrb[0].mxu0
  %v403 = vadd.f32 0.0, %v402
  %v404 = vpop.f32.mrb[0].mxu0
  %405 = vmatprep.mubr.bf16.mxu0 0
  %406 = vmatmul.mubr.bf16.gmra.mrb[0].mxu0 %v273
  %v407 = vpop.f32.mrb[0].mxu0
  %v408 = vadd.f32 0.0, %v407
  %v409 = vpop.f32.mrb[0].mxu0
  %v410 = vpop.f32.mrb[0].mxu0
  %v411 = vadd.f32 0.0, %v410
  %v412 = vpop.f32.mrb[0].mxu0
  %413 = vmatprep.mubr.bf16.mxu0 0
  %414 = vmatmul.mubr.bf16.gmra.mrb[0].mxu0 %v274
  %v415 = vpop.f32.mrb[0].mxu0
  %v416 = vadd.f32 0.0, %v415
  %v417 = vpop.f32.mrb[0].mxu0
  %v418 = vpop.f32.mrb[0].mxu0
  %v419 = vadd.f32 0.0, %v418
  %v420 = vpop.f32.mrb[0].mxu0
  %421 = vmatprep.mubr.bf16.mxu0 0
  %422 = vmatmul.mubr.bf16.gmra.mrb[0].mxu0 %v275
  %v423 = vpop.f32.mrb[0].mxu0
  %v424 = vadd.f32 0.0, %v423
  %v425 = vpop.f32.mrb[0].mxu0
  %v426 = vpop.f32.mrb[0].mxu0
  %v427 = vadd.f32 0.0, %v426
  %v428 = vpop.f32.mrb[0].mxu0
  %429 = vmatprep.mubr.bf16.mxu0 0
  %430 = vmatmul.mubr.bf16.gmra.mrb[0].mxu0 %v276
  %v431 = vpop.f32.mrb[0].mxu0
  %v432 = vadd.f32 0.0, %v431
  %v433 = vpop.f32.mrb[0].mxu0
  %v434 = vpop.f32.mrb[0].mxu0
  %v435 = vadd.f32 0.0, %v434
  %v436 = vpop.f32.mrb[0].mxu0
  %437 = vdwg.mxu0
  %v438 = vpack.c.bf16 %v379, %v376
  %v439 = vpack.c.bf16 %v387, %v384
  %v440 = vpack.c.bf16 %v395, %v392
  %v441 = vpack.c.bf16 %v403, %v400
  %v442 = vpack.c.bf16 %v411, %v408
  %v443 = vpack.c.bf16 %v419, %v416
  %v444 = vpack.c.bf16 %v427, %v424
  %v445 = vpack.c.bf16 %v435, %v432
  %v446 = vld [vmem:[%s4] sm:$0x1]
  %v448 = vlaneseq
  %v449 = vshrl.u32 %v448, 7
  %v450 = vsub.s32 0, %v449
  %v451 = vrot.slane %v446, %v450
  %453 = vmatprep.subr.bf16.mxu0 0
  %454 = vmatpush1.bf16.msra.mxu0 %v438
  %455 = vmatprep.subr.bf16.mxu0 0
  %456 = vmatpush1.bf16.msra.mxu0 %v439
  %457 = vmatprep.subr.bf16.mxu0 0
  %458 = vmatpush1.bf16.msra.mxu0 %v440
  %459 = vmatprep.subr.bf16.mxu0 0
  %460 = vmatpush1.bf16.msra.mxu0 %v441
  %461 = vmatprep.subr.bf16.mxu0 0
  %462 = vmatpush1.bf16.msra.mxu0 %v442
  %463 = vmatprep.subr.bf16.mxu0 0
  %464 = vmatpush1.bf16.msra.mxu0 %v443
  %465 = vmatprep.subr.bf16.mxu0 0
  %466 = vmatpush1.bf16.msra.mxu0 %v444
  %467 = vmatprep.subr.bf16.mxu0 0
  %468 = vmatpush1.bf16.msra.mxu0 %v445
  %469 = vmatprep.subr.bf16.mxu0 0
  %470 = vmatpush1.bf16.msra.mxu0 0
  %471 = vmatprep.subr.bf16.mxu0 0
  %472 = vmatpush1.bf16.msra.mxu0 0
  %473 = vmatprep.subr.bf16.mxu0 0
  %474 = vmatpush1.bf16.msra.mxu0 0
  %475 = vmatprep.subr.bf16.mxu0 0
  %476 = vmatpush1.bf16.msra.mxu0 0
  %477 = vmatprep.subr.bf16.mxu0 0
  %478 = vmatpush1.bf16.msra.mxu0 0
  %479 = vmatprep.subr.bf16.mxu0 0
  %480 = vmatpush1.bf16.msra.mxu0 0
  %481 = vmatprep.subr.bf16.mxu0 0
  %482 = vmatpush1.bf16.msra.mxu0 0
  %483 = vmatprep.subr.bf16.mxu0 0
  %484 = vmatpush1.bf16.msra.mxu0 0
  %485 = vmatprep.mubr.bf16.mxu0 0
  %486 = vmatmul.mubr.bf16.gmra.mrb[0].mxu0 %v92
  %v487 = vpop.f32.mrb[0].mxu0
  %v488 = vadd.f32 %v451, %v487
  %v489 = vpop.f32.mrb[0].mxu0
  %v490 = vpop.f32.mrb[0].mxu0
  %v491 = vadd.f32 %v451, %v490
  %v492 = vpop.f32.mrb[0].mxu0
  %493 = vmatprep.mubr.bf16.mxu0 0
  %494 = vmatmul.mubr.bf16.gmra.mrb[0].mxu0 %v93
  %v495 = vpop.f32.mrb[0].mxu0
  %v496 = vadd.f32 %v451, %v495
  %v497 = vpop.f32.mrb[0].mxu0
  %v498 = vpop.f32.mrb[0].mxu0
  %v499 = vadd.f32 %v451, %v498
  %v500 = vpop.f32.mrb[0].mxu0
  %501 = vmatprep.mubr.bf16.mxu0 0
  %502 = vmatmul.mubr.bf16.gmra.mrb[0].mxu0 %v94
  %v503 = vpop.f32.mrb[0].mxu0
  %v504 = vadd.f32 %v451, %v503
  %v505 = vpop.f32.mrb[0].mxu0
  %v506 = vpop.f32.mrb[0].mxu0
  %v507 = vadd.f32 %v451, %v506
  %v508 = vpop.f32.mrb[0].mxu0
  %509 = vmatprep.mubr.bf16.mxu0 0
  %510 = vmatmul.mubr.bf16.gmra.mrb[0].mxu0 %v95
  %v511 = vpop.f32.mrb[0].mxu0
  %v512 = vadd.f32 %v451, %v511
  %v513 = vpop.f32.mrb[0].mxu0
  %v514 = vpop.f32.mrb[0].mxu0
  %v515 = vadd.f32 %v451, %v514
  %v516 = vpop.f32.mrb[0].mxu0
  %517 = vmatprep.mubr.bf16.mxu0 0
  %518 = vmatmul.mubr.bf16.gmra.mrb[0].mxu0 %v96
  %v519 = vpop.f32.mrb[0].mxu0
  %v520 = vadd.f32 %v451, %v519
  %v521 = vpop.f32.mrb[0].mxu0
  %v522 = vpop.f32.mrb[0].mxu0
  %v523 = vadd.f32 %v451, %v522
  %v524 = vpop.f32.mrb[0].mxu0
  %525 = vmatprep.mubr.bf16.mxu0 0
  %526 = vmatmul.mubr.bf16.gmra.mrb[0].mxu0 %v97
  %v527 = vpop.f32.mrb[0].mxu0
  %v528 = vadd.f32 %v451, %v527
  %v529 = vpop.f32.mrb[0].mxu0
  %v530 = vpop.f32.mrb[0].mxu0
  %v531 = vadd.f32 %v451, %v530
  %v532 = vpop.f32.mrb[0].mxu0
  %533 = vmatprep.mubr.bf16.mxu0 0
  %534 = vmatmul.mubr.bf16.gmra.mrb[0].mxu0 %v98
  %v535 = vpop.f32.mrb[0].mxu0
  %v536 = vadd.f32 %v451, %v535
  %v537 = vpop.f32.mrb[0].mxu0
  %v538 = vpop.f32.mrb[0].mxu0
  %v539 = vadd.f32 %v451, %v538
  %v540 = vpop.f32.mrb[0].mxu0
  %541 = vmatprep.mubr.bf16.mxu0 0
  %542 = vmatmul.mubr.bf16.gmra.mrb[0].mxu0 %v99
  %v543 = vpop.f32.mrb[0].mxu0
  %v544 = vadd.f32 %v451, %v543
  %v545 = vpop.f32.mrb[0].mxu0
  %v546 = vpop.f32.mrb[0].mxu0
  %v547 = vadd.f32 %v451, %v546
  %v548 = vpop.f32.mrb[0].mxu0
  %549 = vdwg.mxu0
  %v550 = vlaneseq
  %v551 = vand.u32 %v550, 127
  %vm552 = vcmp.lt.s32.totalorder %v551, 16
  %v553 = vsel %vm552, %v488, -3.4028235e+38
  %v554 = vsel %vm552, %v491, -3.4028235e+38
  %v555 = vsel %vm552, %v496, -3.4028235e+38
  %v556 = vsel %vm552, %v499, -3.4028235e+38
  %v557 = vsel %vm552, %v504, -3.4028235e+38
  %v558 = vsel %vm552, %v507, -3.4028235e+38
  %v559 = vsel %vm552, %v512, -3.4028235e+38
  %v560 = vsel %vm552, %v515, -3.4028235e+38
  %v561 = vsel %vm552, %v520, -3.4028235e+38
  %v562 = vsel %vm552, %v523, -3.4028235e+38
  %v563 = vsel %vm552, %v528, -3.4028235e+38
  %v564 = vsel %vm552, %v531, -3.4028235e+38
  %v565 = vsel %vm552, %v536, -3.4028235e+38
  %v566 = vsel %vm552, %v539, -3.4028235e+38
  %v567 = vsel %vm552, %v544, -3.4028235e+38
  %v568 = vsel %vm552, %v547, -3.4028235e+38
  %569 = vmax.xlane.f32.xlu0 %v553
  %v570 = vpop.xlane.xlu0 %569
  %571 = vmax.xlane.f32.xlu0 %v554
  %v572 = vpop.xlane.xlu0 %571
  %573 = vmax.xlane.f32.xlu0 %v555
  %v574 = vpop.xlane.xlu0 %573
  %575 = vmax.xlane.f32.xlu0 %v556
  %v576 = vpop.xlane.xlu0 %575
  %577 = vmax.xlane.f32.xlu0 %v557
  %v578 = vpop.xlane.xlu0 %577
  %579 = vmax.xlane.f32.xlu0 %v558
  %v580 = vpop.xlane.xlu0 %579
  %581 = vmax.xlane.f32.xlu0 %v559
  %v582 = vpop.xlane.xlu0 %581
  %583 = vmax.xlane.f32.xlu0 %v560
  %v584 = vpop.xlane.xlu0 %583
  %585 = vmax.xlane.f32.xlu0 %v561
  %v586 = vpop.xlane.xlu0 %585
  %587 = vmax.xlane.f32.xlu0 %v562
  %v588 = vpop.xlane.xlu0 %587
  %589 = vmax.xlane.f32.xlu0 %v563
  %v590 = vpop.xlane.xlu0 %589
  %591 = vmax.xlane.f32.xlu0 %v564
  %v592 = vpop.xlane.xlu0 %591
  %593 = vmax.xlane.f32.xlu0 %v565
  %v594 = vpop.xlane.xlu0 %593
  %595 = vmax.xlane.f32.xlu0 %v566
  %v596 = vpop.xlane.xlu0 %595
  %597 = vmax.xlane.f32.xlu0 %v567
  %v598 = vpop.xlane.xlu0 %597
  %599 = vmax.xlane.f32.xlu0 %v568
  %v600 = vpop.xlane.xlu0 %599
  %v601 = vsub.f32 %v553, %v570
  %v602 = vsub.f32 %v554, %v572
  %v603 = vsub.f32 %v555, %v574
  %v604 = vsub.f32 %v556, %v576
  %v605 = vsub.f32 %v557, %v578
  %v606 = vsub.f32 %v558, %v580
  %v607 = vsub.f32 %v559, %v582
  %v608 = vsub.f32 %v560, %v584
  %v609 = vsub.f32 %v561, %v586
  %v610 = vsub.f32 %v562, %v588
  %v611 = vsub.f32 %v563, %v590
  %v612 = vsub.f32 %v564, %v592
  %v613 = vsub.f32 %v565, %v594
  %v614 = vsub.f32 %v566, %v596
  %v615 = vsub.f32 %v567, %v598
  %v616 = vsub.f32 %v568, %v600
  %v617 = vmul.f32 %v601, 1.442695
  %v618 = vpow.pop %v617
  %v619 = vmul.f32 %v602, 1.442695
  %v620 = vpow.pop %v619
  %v621 = vmul.f32 %v603, 1.442695
  %v622 = vpow.pop %v621
  %v623 = vmul.f32 %v604, 1.442695
  %v624 = vpow.pop %v623
  %v625 = vmul.f32 %v605, 1.442695
  %v626 = vpow.pop %v625
  %v627 = vmul.f32 %v606, 1.442695
  %v628 = vpow.pop %v627
  %v629 = vmul.f32 %v607, 1.442695
  %v630 = vpow.pop %v629
  %v631 = vmul.f32 %v608, 1.442695
  %v632 = vpow.pop %v631
  %v633 = vmul.f32 %v609, 1.442695
  %v634 = vpow.pop %v633
  %v635 = vmul.f32 %v610, 1.442695
  %v636 = vpow.pop %v635
  %v637 = vmul.f32 %v611, 1.442695
  %v638 = vpow.pop %v637
  %v639 = vmul.f32 %v612, 1.442695
  %v640 = vpow.pop %v639
  %v641 = vmul.f32 %v613, 1.442695
  %v642 = vpow.pop %v641
  %v643 = vmul.f32 %v614, 1.442695
  %v644 = vpow.pop %v643
  %v645 = vmul.f32 %v615, 1.442695
  %v646 = vpow.pop %v645
  %v647 = vmul.f32 %v616, 1.442695
  %v648 = vpow.pop %v647
  %649 = vadd.xlane.f32.xlu0 %v618
  %v650 = vpop.xlane.xlu0 %649
  %651 = vadd.xlane.f32.xlu0 %v620
  %v652 = vpop.xlane.xlu0 %651
  %653 = vadd.xlane.f32.xlu0 %v622
  %v654 = vpop.xlane.xlu0 %653
  %655 = vadd.xlane.f32.xlu0 %v624
  %v656 = vpop.xlane.xlu0 %655
  %657 = vadd.xlane.f32.xlu0 %v626
  %v658 = vpop.xlane.xlu0 %657
  %659 = vadd.xlane.f32.xlu0 %v628
  %v660 = vpop.xlane.xlu0 %659
  %661 = vadd.xlane.f32.xlu0 %v630
  %v662 = vpop.xlane.xlu0 %661
  %663 = vadd.xlane.f32.xlu0 %v632
  %v664 = vpop.xlane.xlu0 %663
  %665 = vadd.xlane.f32.xlu0 %v634
  %v666 = vpop.xlane.xlu0 %665
  %667 = vadd.xlane.f32.xlu0 %v636
  %v668 = vpop.xlane.xlu0 %667
  %669 = vadd.xlane.f32.xlu0 %v638
  %v670 = vpop.xlane.xlu0 %669
  %671 = vadd.xlane.f32.xlu0 %v640
  %v672 = vpop.xlane.xlu0 %671
  %673 = vadd.xlane.f32.xlu0 %v642
  %v674 = vpop.xlane.xlu0 %673
  %675 = vadd.xlane.f32.xlu0 %v644
  %v676 = vpop.xlane.xlu0 %675
  %677 = vadd.xlane.f32.xlu0 %v646
  %v678 = vpop.xlane.xlu0 %677
  %679 = vadd.xlane.f32.xlu0 %v648
  %v680 = vpop.xlane.xlu0 %679
  %v681 = vlog2.pop %v650
  %v682 = vmul.f32 %v681, 0.6931472
  %v683 = vlog2.pop %v652
  %v684 = vmul.f32 %v683, 0.6931472
  %v685 = vlog2.pop %v654
  %v686 = vmul.f32 %v685, 0.6931472
  %v687 = vlog2.pop %v656
  %v688 = vmul.f32 %v687, 0.6931472
  %v689 = vlog2.pop %v658
  %v690 = vmul.f32 %v689, 0.6931472
  %v691 = vlog2.pop %v660
  %v692 = vmul.f32 %v691, 0.6931472
  %v693 = vlog2.pop %v662
  %v694 = vmul.f32 %v693, 0.6931472
  %v695 = vlog2.pop %v664
  %v696 = vmul.f32 %v695, 0.6931472
  %v697 = vlog2.pop %v666
  %v698 = vmul.f32 %v697, 0.6931472
  %v699 = vlog2.pop %v668
  %v700 = vmul.f32 %v699, 0.6931472
  %v701 = vlog2.pop %v670
  %v702 = vmul.f32 %v701, 0.6931472
  %v703 = vlog2.pop %v672
  %v704 = vmul.f32 %v703, 0.6931472
  %v705 = vlog2.pop %v674
  %v706 = vmul.f32 %v705, 0.6931472
  %v707 = vlog2.pop %v676
  %v708 = vmul.f32 %v707, 0.6931472
  %v709 = vlog2.pop %v678
  %v710 = vmul.f32 %v709, 0.6931472
  %v711 = vlog2.pop %v680
  %v712 = vmul.f32 %v711, 0.6931472
  %v713 = vsub.f32 %v601, %v682
  %v714 = vsub.f32 %v602, %v684
  %v715 = vsub.f32 %v603, %v686
  %v716 = vsub.f32 %v604, %v688
  %v717 = vsub.f32 %v605, %v690
  %v718 = vsub.f32 %v606, %v692
  %v719 = vsub.f32 %v607, %v694
  %v720 = vsub.f32 %v608, %v696
  %v721 = vsub.f32 %v609, %v698
  %v722 = vsub.f32 %v610, %v700
  %v723 = vsub.f32 %v611, %v702
  %v724 = vsub.f32 %v612, %v704
  %v725 = vsub.f32 %v613, %v706
  %v726 = vsub.f32 %v614, %v708
  %v727 = vsub.f32 %v615, %v710
  %v728 = vsub.f32 %v616, %v712
  %729 = vst [vmem:[%s5] sm:$0xff] %v713
  %730 = vst [vmem:[%s5 + $0x8] sm:$0xff] %v714
  %731 = vst [vmem:[%s5 + $0x10] sm:$0xff] %v715
  %732 = vst [vmem:[%s5 + $0x18] sm:$0xff] %v716
  %733 = vst [vmem:[%s5 + $0x20] sm:$0xff] %v717
  %734 = vst [vmem:[%s5 + $0x28] sm:$0xff] %v718
  %735 = vst [vmem:[%s5 + $0x30] sm:$0xff] %v719
  %736 = vst [vmem:[%s5 + $0x38] sm:$0xff] %v720
  %737 = vst [vmem:[%s5 + $0x40] sm:$0xff] %v721
  %738 = vst [vmem:[%s5 + $0x48] sm:$0xff] %v722
  %739 = vst [vmem:[%s5 + $0x50] sm:$0xff] %v723
  %740 = vst [vmem:[%s5 + $0x58] sm:$0xff] %v724
  %741 = vst [vmem:[%s5 + $0x60] sm:$0xff] %v725
  %742 = vst [vmem:[%s5 + $0x68] sm:$0xff] %v726
  %743 = vst [vmem:[%s5 + $0x70] sm:$0xff] %v727
  %744 = vst [vmem:[%s5 + $0x78] sm:$0xff] %v728
  // Predicated region
  $region22: #{simple_gcn_forward.1} parent=0 // pred_check
    _
  $region23: #{simple_gcn_forward.1} parent=0 // pred_check_branch
    %746 = sbr.rel (0) target = $region25
  $region24: #{simple_gcn_forward.1} parent=0 // pred_region
    _
  $region25: #{simple_gcn_forward.1} parent=0 // pred_fallthru
    _
  // Predicated region
  $region26: #{simple_gcn_forward.1} parent=0 // pred_check
    _
  $region27: #{simple_gcn_forward.1} parent=0 // pred_check_branch
    %748 = sbr.rel (0) target = $region29
  $region28: #{simple_gcn_forward.1} parent=0 // pred_region
    _
  $region29: #{simple_gcn_forward.1} parent=0 // pred_fallthru
    _

</llo_original>
